<compile_context>
chip_gen: v6e
topology: v6e:2x2x1
jax: 0.10.0
libtpu: 0.0.40
codegen_flags: <defaults>
</compile_context>

<pallas_src>
import functools

import numpy as np

import jax
import jax.numpy as jnp
from jax import lax
from jax.experimental import pallas as pl
from jax.experimental.pallas import tpu as pltpu

KH = KW = 3  # kernel size
PAD = 1      # padding


def _conv3x3_kernel(x_ref, w_ref, b_ref, m_ref, o_ref, *, width):
    """One batch sample per grid step.

    x_ref: (1, Cin, H*W)        sample; channels on sublanes, spatial lane-dense
    w_ref: (Cout, KH*KW*Cin)    weights; column k = (kh*KW + kw)*Cin + ci
    b_ref: (Cout, 1)            bias column
    m_ref: (KH*KW*Cin, H*W)     0/1 border-validity mask (rows match patch rows)
    o_ref: (1, Cout, H*W)       output sample
    """
    x = x_ref[0]                     # (Cin, HW), lane-dense

    # Implicit im2col: for tap (dh, dw) the source pixel of flat output position
    # m is x[:, m + dh*W + dw] (zero outside the image).  Each shift is a lane
    # rotation (static slice + concat lowers to XLU lane rotates); out-of-image
    # / row-wrapped positions are zeroed by the precomputed mask afterwards.
    blocks = []
    for dh in (-1, 0, 1):
        for dw in (-1, 0, 1):
            s = dh * width + dw
            if s == 0:
                blocks.append(x)
            else:
                # y[:, m] = x[:, (m + s) mod HW]  (works for both signs of s)
                blocks.append(jnp.concatenate([x[:, s:], x[:, :s]], axis=1))
    patch = jnp.concatenate(blocks, axis=0) * m_ref[...]      # (27, HW)

    # Single K=27 MXU matmul with a lane-dense (Cout, HW) float32 accumulator.
    acc = jnp.dot(w_ref[...], patch, preferred_element_type=jnp.float32)
    acc = acc + b_ref[...]                                    # (Cout, 1) broadcast
    o_ref[0, :, :] = acc.astype(o_ref.dtype)


def _border_mask(h, w, cin):
    """(KH*KW*Cin, H*W) float32 0/1 mask.

    Row (t*Cin + ci), t = kh*KW + kw, is 1 where the tap's source pixel
    (y + kh - PAD, x + kw - PAD) lies inside the image, else 0.
    Pure numpy on static shapes -> baked in as an XLA constant.
    """
    ys = np.repeat(np.arange(h), w)     # (H*W,)
    xs = np.tile(np.arange(w), h)       # (H*W,)
    rows = []
    for dh in (-1, 0, 1):
        for dw in (-1, 0, 1):
            ok = (ys + dh >= 0) & (ys + dh < h) & (xs + dw >= 0) & (xs + dw < w)
            rows.append(ok.astype(np.float32))
    return np.repeat(np.stack(rows, axis=0), cin, axis=0)      # (27, H*W)


def conv2d_3x3_pallas(x_nchw, weight_oihw, bias):
    """Conv2d(3, 6, 3, stride=1, padding=1) forward.

    x_nchw:      (N, Cin, H, W)    float32 (PyTorch NCHW)
    weight_oihw: (Cout, Cin, 3, 3) float32 (PyTorch OIHW)
    bias:        (Cout,)           float32
    returns:     (N, Cout, H, W)   float32 (NCHW)
    """
    n, cin, h, w = x_nchw.shape
    cout = weight_oihw.shape[0]
    hw = h * w
    k = KH * KW * cin

    # One-time parameter / constant prep (tiny, batch-independent).
    w_mat = jnp.transpose(weight_oihw, (0, 2, 3, 1)).reshape(cout, k)  # k=(kh,kw,ci)
    b_col = bias.reshape(cout, 1)
    mask = jnp.asarray(_border_mask(h, w, cin))

    # Activations: contiguous (free) reshape only — no transpose, no pad.
    x_flat = x_nchw.reshape(n, cin, hw)

    itemsize = jnp.dtype(x_nchw.dtype).itemsize
    cost = pl.CostEstimate(
        flops=2 * n * cout * k * hw,
        transcendentals=0,
        bytes_accessed=(n * cin * hw + n * cout * hw) * itemsize
                       + (cout * k + cout + k * hw) * 4,
    )

    out_flat = pl.pallas_call(
        functools.partial(_conv3x3_kernel, width=w),
        out_shape=jax.ShapeDtypeStruct((n, cout, hw), x_nchw.dtype),
        grid=(n,),
        in_specs=[
            pl.BlockSpec((1, cin, hw), lambda i: (i, 0, 0)),   # per-sample block
            pl.BlockSpec((cout, k), lambda i: (0, 0)),         # weights (resident)
            pl.BlockSpec((cout, 1), lambda i: (0, 0)),         # bias (resident)
            pl.BlockSpec((k, hw), lambda i: (0, 0)),           # border mask (resident)
        ],
        out_specs=pl.BlockSpec((1, cout, hw), lambda i: (i, 0, 0)),
        compiler_params=pltpu.CompilerParams(
            dimension_semantics=("parallel",)),
        cost_estimate=cost,
    )(x_flat, w_mat, b_col, mask)

    return out_flat.reshape(n, cout, h, w)   # contiguous (free) reshape back to NCHW


def _reference_conv(x_nchw, weight_oihw, bias):
    # Pure-JAX reference (XLA conv) for a correctness check.
    out = lax.conv_general_dilated(
        x_nchw, weight_oihw,
        window_strides=(1, 1), padding=((PAD, PAD), (PAD, PAD)),
        dimension_numbers=("NCHW", "OIHW", "NCHW"),
    )
    return out + bias.reshape(1, -1, 1, 1)


if __name__ == "__main__":
    key = jax.random.PRNGKey(0)
    k_x, k_w, k_b = jax.random.split(key, 3)

    N, Cin, H, W = 2, 3, 16, 16
    Cout = 6

    # Deterministic parameter init mirroring PyTorch Conv2d default
    # (uniform in +/- 1/sqrt(fan_in), fan_in = Cin*KH*KW).
    fan_in = Cin * KH * KW
    bound = 1.0 / (fan_in ** 0.5)
    x = jax.random.normal(k_x, (N, Cin, H, W), dtype=jnp.float32)
    weight = jax.random.uniform(k_w, (Cout, Cin, KH, KW), jnp.float32, -bound, bound)
    bias = jax.random.uniform(k_b, (Cout,), jnp.float32, -bound, bound)

    out = jax.jit(conv2d_3x3_pallas)(x, weight, bias)
    out = jax.block_until_ready(out)

    ref = _reference_conv(x, weight, bias)
    assert out.shape == (N, Cout, H, W)
    assert jnp.allclose(out, ref, atol=1e-4, rtol=1e-4), "mismatch vs XLA conv reference"

    print("KERNEL_OK")
</pallas_src>

<mosaic_0001>
module attributes {stable_mosaic.version = 11 : i64} {
  func.func @_conv3x3_kernel(%arg0: i32, %arg1: memref<1x3x256xf32, #tpu.memory_space<vmem>>, %arg2: memref<6x27xf32, #tpu.memory_space<vmem>>, %arg3: memref<6x1xf32, #tpu.memory_space<vmem>>, %arg4: memref<27x256xf32, #tpu.memory_space<vmem>>, %arg5: memref<1x6x256xf32, #tpu.memory_space<vmem>>) attributes {dimension_semantics = [#tpu.dimension_semantics<parallel>], iteration_bounds = array<i64: 2>, scalar_prefetch = 0 : i64, scratch_operands = 0 : i64, tpu.core_type = #tpu.core_type<tc>, window_params = [{transform_indices = @transform_0, window_bounds = array<i64: 1, 3, 256>}, {pipeline_mode = #tpu.pipeline_mode<synchronous>, transform_indices = @transform_1, window_bounds = array<i64: 6, 27>}, {pipeline_mode = #tpu.pipeline_mode<synchronous>, transform_indices = @transform_2, window_bounds = array<i64: 6, 1>}, {pipeline_mode = #tpu.pipeline_mode<synchronous>, transform_indices = @transform_3, window_bounds = array<i64: 27, 256>}, {transform_indices = @transform_4, window_bounds = array<i64: 1, 6, 256>}]} {
    %c0 = arith.constant 0 : index
    %c0_0 = arith.constant 0 : index
    %c0_1 = arith.constant 0 : index
    %0 = vector.load %arg1[%c0, %c0_0, %c0_1] : memref<1x3x256xf32, #tpu.memory_space<vmem>>, vector<1x3x256xf32>
    %1 = vector.shape_cast %0 : vector<1x3x256xf32> to vector<3x256xf32>
    %2 = vector.extract_strided_slice %1 {offsets = [0, 239], sizes = [3, 17], strides = [1, 1]} : vector<3x256xf32> to vector<3x17xf32>
    %3 = vector.extract_strided_slice %1 {offsets = [0, 0], sizes = [3, 239], strides = [1, 1]} : vector<3x256xf32> to vector<3x239xf32>
    %4 = tpu.concatenate %2, %3 in 1 : vector<3x17xf32>, vector<3x239xf32> -> vector<3x256xf32>
    %5 = vector.extract_strided_slice %1 {offsets = [0, 240], sizes = [3, 16], strides = [1, 1]} : vector<3x256xf32> to vector<3x16xf32>
    %6 = vector.extract_strided_slice %1 {offsets = [0, 0], sizes = [3, 240], strides = [1, 1]} : vector<3x256xf32> to vector<3x240xf32>
    %7 = tpu.concatenate %5, %6 in 1 : vector<3x16xf32>, vector<3x240xf32> -> vector<3x256xf32>
    %8 = vector.extract_strided_slice %1 {offsets = [0, 241], sizes = [3, 15], strides = [1, 1]} : vector<3x256xf32> to vector<3x15xf32>
    %9 = vector.extract_strided_slice %1 {offsets = [0, 0], sizes = [3, 241], strides = [1, 1]} : vector<3x256xf32> to vector<3x241xf32>
    %10 = tpu.concatenate %8, %9 in 1 : vector<3x15xf32>, vector<3x241xf32> -> vector<3x256xf32>
    %11 = vector.extract_strided_slice %1 {offsets = [0, 255], sizes = [3, 1], strides = [1, 1]} : vector<3x256xf32> to vector<3x1xf32>
    %12 = vector.extract_strided_slice %1 {offsets = [0, 0], sizes = [3, 255], strides = [1, 1]} : vector<3x256xf32> to vector<3x255xf32>
    %13 = tpu.concatenate %11, %12 in 1 : vector<3x1xf32>, vector<3x255xf32> -> vector<3x256xf32>
    %14 = vector.extract_strided_slice %1 {offsets = [0, 1], sizes = [3, 255], strides = [1, 1]} : vector<3x256xf32> to vector<3x255xf32>
    %15 = vector.extract_strided_slice %1 {offsets = [0, 0], sizes = [3, 1], strides = [1, 1]} : vector<3x256xf32> to vector<3x1xf32>
    %16 = tpu.concatenate %14, %15 in 1 : vector<3x255xf32>, vector<3x1xf32> -> vector<3x256xf32>
    %17 = vector.extract_strided_slice %1 {offsets = [0, 15], sizes = [3, 241], strides = [1, 1]} : vector<3x256xf32> to vector<3x241xf32>
    %18 = vector.extract_strided_slice %1 {offsets = [0, 0], sizes = [3, 15], strides = [1, 1]} : vector<3x256xf32> to vector<3x15xf32>
    %19 = tpu.concatenate %17, %18 in 1 : vector<3x241xf32>, vector<3x15xf32> -> vector<3x256xf32>
    %20 = vector.extract_strided_slice %1 {offsets = [0, 16], sizes = [3, 240], strides = [1, 1]} : vector<3x256xf32> to vector<3x240xf32>
    %21 = vector.extract_strided_slice %1 {offsets = [0, 0], sizes = [3, 16], strides = [1, 1]} : vector<3x256xf32> to vector<3x16xf32>
    %22 = tpu.concatenate %20, %21 in 1 : vector<3x240xf32>, vector<3x16xf32> -> vector<3x256xf32>
    %23 = vector.extract_strided_slice %1 {offsets = [0, 17], sizes = [3, 239], strides = [1, 1]} : vector<3x256xf32> to vector<3x239xf32>
    %24 = vector.extract_strided_slice %1 {offsets = [0, 0], sizes = [3, 17], strides = [1, 1]} : vector<3x256xf32> to vector<3x17xf32>
    %25 = tpu.concatenate %23, %24 in 1 : vector<3x239xf32>, vector<3x17xf32> -> vector<3x256xf32>
    %26 = tpu.concatenate %4, %7, %10, %13, %1, %16, %19, %22, %25 in 0 : vector<3x256xf32>, vector<3x256xf32>, vector<3x256xf32>, vector<3x256xf32>, vector<3x256xf32>, vector<3x256xf32>, vector<3x256xf32>, vector<3x256xf32>, vector<3x256xf32> -> vector<27x256xf32>
    %c0_2 = arith.constant 0 : index
    %c0_3 = arith.constant 0 : index
    %27 = vector.load %arg4[%c0_2, %c0_3] : memref<27x256xf32, #tpu.memory_space<vmem>>, vector<27x256xf32>
    %28 = arith.mulf %26, %27 : vector<27x256xf32>
    %c0_4 = arith.constant 0 : index
    %c0_5 = arith.constant 0 : index
    %29 = vector.load %arg2[%c0_4, %c0_5] : memref<6x27xf32, #tpu.memory_space<vmem>>, vector<6x27xf32>
    %cst = arith.constant dense<0.000000e+00> : vector<6x256xf32>
    %30 = tpu.matmul %29, %28, %cst {dimension_numbers = #tpu.dot_dimension_numbers<[1], [0], [0], [1], [0, 0, 1, 1], [], []>} : vector<6x27xf32>, vector<27x256xf32>, vector<6x256xf32> -> vector<6x256xf32>
    %c0_6 = arith.constant 0 : index
    %c0_7 = arith.constant 0 : index
    %31 = vector.load %arg3[%c0_6, %c0_7] : memref<6x1xf32, #tpu.memory_space<vmem>>, vector<6x1xf32>
    %32 = vector.broadcast %31 : vector<6x1xf32> to vector<6x256xf32>
    %33 = arith.addf %30, %32 : vector<6x256xf32>
    %c0_8 = arith.constant 0 : index
    %c0_9 = arith.constant 0 : index
    %c0_10 = arith.constant 0 : index
    %34 = vector.load %arg5[%c0_8, %c0_9, %c0_10] : memref<1x6x256xf32, #tpu.memory_space<vmem>>, vector<1x6x256xf32>
    %35 = vector.shape_cast %34 : vector<1x6x256xf32> to vector<6x256xf32>
    %36 = vector.shape_cast %33 : vector<6x256xf32> to vector<1x6x256xf32>
    tpu.vector_store %arg5[%c0_8, %c0_9, %c0_10], %36 {strides = array<i32>} : memref<1x6x256xf32, #tpu.memory_space<vmem>>, vector<1x6x256xf32>,
    return
  }
  func.func @transform_0(%arg0: i32) -> (i32, i32, i32) {
    %c0_i32 = arith.constant 0 : i32
    %c0_i32_0 = arith.constant 0 : i32
    %c0_i32_1 = arith.constant 0 : i32
    return %arg0, %c0_i32, %c0_i32_0 : i32, i32, i32
  }
  func.func @transform_1(%arg0: i32) -> (i32, i32) {
    %c0_i32 = arith.constant 0 : i32
    %c0_i32_0 = arith.constant 0 : i32
    %c0_i32_1 = arith.constant 0 : i32
    return %c0_i32, %c0_i32_0 : i32, i32
  }
  func.func @transform_2(%arg0: i32) -> (i32, i32) {
    %c0_i32 = arith.constant 0 : i32
    %c0_i32_0 = arith.constant 0 : i32
    %c0_i32_1 = arith.constant 0 : i32
    return %c0_i32, %c0_i32_0 : i32, i32
  }
  func.func @transform_3(%arg0: i32) -> (i32, i32) {
    %c0_i32 = arith.constant 0 : i32
    %c0_i32_0 = arith.constant 0 : i32
    %c0_i32_1 = arith.constant 0 : i32
    return %c0_i32, %c0_i32_0 : i32, i32
  }
  func.func @transform_4(%arg0: i32) -> (i32, i32, i32) {
    %c0_i32 = arith.constant 0 : i32
    %c0_i32_0 = arith.constant 0 : i32
    %c0_i32_1 = arith.constant 0 : i32
    return %arg0, %c0_i32, %c0_i32_0 : i32, i32, i32
  }
}

</mosaic_0001>

<llo_original>
// kernel: conv2d_3x3_pallas.1
$region0: #{conv2d_3x3_pallas.1}
  #allocation0 [shape = 'u32[]', space=smem, size = 0x4, offset = 0x4, fixed_abs, tag = 'smem constant byte address 0x4 - core index']
  #allocation1 [shape = 'u32[144,128]{1,0:T(1,128)}', space=vmem, size = 0x12000, scoped, tag = 'internal scratch']
  %s0 = inlined_call_operand.vmem [shape: f32[2,3,256], index: 0, kind: input, shape index: {}]
  %s1 = inlined_call_operand.vmem [shape: f32[6,27], index: 1, kind: input, shape index: {}]
  %s2 = inlined_call_operand.vmem [shape: f32[6,1], index: 2, kind: input, shape index: {}]
  %s3 = inlined_call_operand.vmem [shape: f32[27,256], index: 3, kind: input, shape index: {}]
  %s4 = inlined_call_operand.vmem [shape: f32[2,6,256], index: 4, kind: output, shape index: {}]
  %s5 = sld [smem:[#allocation0]]
  $region49: #{conv2d_3x3_pallas.1} parent=0
    _
  %s7 = ssub.s32 1, %s5
  %s8 = scalar_select 0, %s7, %s5
  loop: start=0, step=1, limit=4
  $region2: #{conv2d_3x3_pallas.1} parent=0 // loop_pre_header
    _
  $region3: #{conv2d_3x3_pallas.1} parent=0 // loop_header
    %s10 = sphi 0, %s14
    %p11 = scmp.ge.s32.totalorder %s10, 4
    %s20 = sphi 0, %s22
    %s23 = sphi 0, %s20
    %s24 = sphi 0, %s23
    %s40 = sphi 0, %s24
    %s44 = sphi 0, %s44
    %s46 = sphi 0, %s44
    %s47 = sphi 0, %s46
    %s61 = sphi 0, %s47
    %s65 = sphi 0, %s65
    %s67 = sphi 0, %s65
    %s68 = sphi 0, %s67
    %s82 = sphi 0, %s68
    %s86 = sphi 0, %s86
    %s88 = sphi 0, %s86
    %s89 = sphi 0, %s88
    %s103 = sphi 0, %s89
    %s109 = sphi 0, %s111
    %s112 = sphi 0, %s109
    %s113 = sphi 0, %s112
    %s129 = sphi 0, %s113
  $region4: #{conv2d_3x3_pallas.1} parent=0 // loop_header_branch
    %13 = sbr.rel (%p11) target = $region8
  $region5: #{conv2d_3x3_pallas.1} parent=0 // loop_body
    %s15 = ssub.s32 %s10, 1
    %s16 = ssub.s32 %s10, 2
    %s17 = sadd.s32 %s10, 1
    %s18 = ssub.s32 %s10, %s17
    %p19 = scmp.eq.s32.totalorder %s18, 0
    %s21 = sadd.s32 %s20, 1
    %s22 = scalar_select %p19, %s20, %s21
    %p25 = pneg %p19
    %p26 = scmp.eq.s32.totalorder %s10, 1
    %p27 = por %p25, %p26
    %p28 = scmp.ne.s32.totalorder %s20, %s23
    %p29 = scmp.eq.s32.totalorder %s10, 0
    %p30 = por %p28, %p29
    %p31 = scmp.ne.s32.totalorder %s20, %s23
    %p32 = scmp.eq.s32.totalorder %s15, 1
    %p33 = por %p31, %p32
    %p34 = scmp.ne.s32.totalorder %s23, %s24
    %p35 = scmp.eq.s32.totalorder %s15, 0
    %p36 = por %p34, %p35
    %p37 = scmp.ne.s32.totalorder %s23, %s24
    %p38 = scmp.eq.s32.totalorder %s16, 1
    %p39 = por %p37, %p38
    %p41 = scmp.ne.s32.totalorder %s24, %s40
    %p42 = scmp.eq.s32.totalorder %s16, 0
    %p43 = por %p41, %p42
    %s45 = sadd.s32 %s44, 1
    %p48 = scmp.eq.s32.totalorder %s10, 1
    %p49 = scmp.ne.s32.totalorder %s44, %s46
    %p50 = scmp.eq.s32.totalorder %s10, 0
    %p51 = por %p49, %p50
    %p52 = scmp.ne.s32.totalorder %s44, %s46
    %p53 = scmp.eq.s32.totalorder %s15, 1
    %p54 = por %p52, %p53
    %p55 = scmp.ne.s32.totalorder %s46, %s47
    %p56 = scmp.eq.s32.totalorder %s15, 0
    %p57 = por %p55, %p56
    %p58 = scmp.ne.s32.totalorder %s46, %s47
    %p59 = scmp.eq.s32.totalorder %s16, 1
    %p60 = por %p58, %p59
    %p62 = scmp.ne.s32.totalorder %s47, %s61
    %p63 = scmp.eq.s32.totalorder %s16, 0
    %p64 = por %p62, %p63
    %s66 = sadd.s32 %s65, 1
    %p69 = scmp.eq.s32.totalorder %s10, 1
    %p70 = scmp.ne.s32.totalorder %s65, %s67
    %p71 = scmp.eq.s32.totalorder %s10, 0
    %p72 = por %p70, %p71
    %p73 = scmp.ne.s32.totalorder %s65, %s67
    %p74 = scmp.eq.s32.totalorder %s15, 1
    %p75 = por %p73, %p74
    %p76 = scmp.ne.s32.totalorder %s67, %s68
    %p77 = scmp.eq.s32.totalorder %s15, 0
    %p78 = por %p76, %p77
    %p79 = scmp.ne.s32.totalorder %s67, %s68
    %p80 = scmp.eq.s32.totalorder %s16, 1
    %p81 = por %p79, %p80
    %p83 = scmp.ne.s32.totalorder %s68, %s82
    %p84 = scmp.eq.s32.totalorder %s16, 0
    %p85 = por %p83, %p84
    %s87 = sadd.s32 %s86, 1
    %p90 = scmp.eq.s32.totalorder %s10, 1
    %p91 = scmp.ne.s32.totalorder %s86, %s88
    %p92 = scmp.eq.s32.totalorder %s10, 0
    %p93 = por %p91, %p92
    %p94 = scmp.ne.s32.totalorder %s86, %s88
    %p95 = scmp.eq.s32.totalorder %s15, 1
    %p96 = por %p94, %p95
    %p97 = scmp.ne.s32.totalorder %s88, %s89
    %p98 = scmp.eq.s32.totalorder %s15, 0
    %p99 = por %p97, %p98
    %p100 = scmp.ne.s32.totalorder %s88, %s89
    %p101 = scmp.eq.s32.totalorder %s16, 1
    %p102 = por %p100, %p101
    %p104 = scmp.ne.s32.totalorder %s89, %s103
    %p105 = scmp.eq.s32.totalorder %s16, 0
    %p106 = por %p104, %p105
    %s107 = ssub.s32 %s10, %s17
    %p108 = scmp.eq.s32.totalorder %s107, 0
    %s110 = sadd.s32 %s109, 1
    %s111 = scalar_select %p108, %s109, %s110
    %p114 = pneg %p108
    %p115 = scmp.eq.s32.totalorder %s10, 1
    %p116 = por %p114, %p115
    %p117 = scmp.ne.s32.totalorder %s109, %s112
    %p118 = scmp.eq.s32.totalorder %s10, 0
    %p119 = por %p117, %p118
    %p120 = scmp.ne.s32.totalorder %s109, %s112
    %p121 = scmp.eq.s32.totalorder %s15, 1
    %p122 = por %p120, %p121
    %p123 = scmp.ne.s32.totalorder %s112, %s113
    %p124 = scmp.eq.s32.totalorder %s15, 0
    %p125 = por %p123, %p124
    %p126 = scmp.ne.s32.totalorder %s112, %s113
    %p127 = scmp.eq.s32.totalorder %s16, 1
    %p128 = por %p126, %p127
    %p130 = scmp.ne.s32.totalorder %s113, %s129
    %p131 = scmp.eq.s32.totalorder %s16, 0
    %p132 = por %p130, %p131
    %p133 = scmp.le.s32.totalorder 1, %s10
    %p134 = scmp.lt.s32.totalorder %s10, 3
    %p135 = pnand %p133, %p134
    %p136 = pneg %p135
    // Predicated region
    $region9: #{conv2d_3x3_pallas.1} parent=5 // pred_check
      _
    $region10: #{conv2d_3x3_pallas.1} parent=5 // pred_check_branch
      %138 = sbr.rel (%p135) target = $region12
    $region11: #{conv2d_3x3_pallas.1} parent=5 // pred_region
      %s139 = ssub.s32 %s10, 1
      // Predicated region
      $region13: #{conv2d_3x3_pallas.1} parent=11 // pred_check
        %p140 = pneg %p57
      $region14: #{conv2d_3x3_pallas.1} parent=11 // pred_check_branch
        %142 = sbr.rel (%p140) target = $region16
      $region15: #{conv2d_3x3_pallas.1} parent=11 // pred_region
        _
      $region16: #{conv2d_3x3_pallas.1} parent=11 // pred_fallthru
        _
      // Predicated region
      $region17: #{conv2d_3x3_pallas.1} parent=11 // pred_check
        %p143 = pneg %p78
      $region18: #{conv2d_3x3_pallas.1} parent=11 // pred_check_branch
        %145 = sbr.rel (%p143) target = $region20
      $region19: #{conv2d_3x3_pallas.1} parent=11 // pred_region
        _
      $region20: #{conv2d_3x3_pallas.1} parent=11 // pred_fallthru
        _
      // Predicated region
      $region21: #{conv2d_3x3_pallas.1} parent=11 // pred_check
        %p146 = pneg %p99
      $region22: #{conv2d_3x3_pallas.1} parent=11 // pred_check_branch
        %148 = sbr.rel (%p146) target = $region24
      $region23: #{conv2d_3x3_pallas.1} parent=11 // pred_region
        _
      $region24: #{conv2d_3x3_pallas.1} parent=11 // pred_fallthru
        _
    $region12: #{conv2d_3x3_pallas.1} parent=5 // pred_fallthru
      _
    %p149 = scmp.lt.s32.totalorder %s10, 2
    // Predicated region
    $region25: #{conv2d_3x3_pallas.1} parent=5 // pred_check
      %p150 = pneg %p149
    $region26: #{conv2d_3x3_pallas.1} parent=5 // pred_check_branch
      %152 = sbr.rel (%p150) target = $region28
    $region27: #{conv2d_3x3_pallas.1} parent=5 // pred_region
      // Predicated region
      $region29: #{conv2d_3x3_pallas.1} parent=27 // pred_check
        %p153 = pneg %p30
      $region30: #{conv2d_3x3_pallas.1} parent=27 // pred_check_branch
        %155 = sbr.rel (%p153) target = $region32
      $region31: #{conv2d_3x3_pallas.1} parent=27 // pred_region
        %p156 = scmp.lt.s32.totalorder %s10, 1
        %s157 = scalar_select %p156, %s10, 1
        %s158 = smul.addr %s157, 2
        %s159 = smul.addr %s158, 4
        %s160 = scalar_lea.vmem %s0, %s159
      $region32: #{conv2d_3x3_pallas.1} parent=27 // pred_fallthru
        _
    $region28: #{conv2d_3x3_pallas.1} parent=5 // pred_fallthru
      _
    %p161 = scmp.le.s32.totalorder 1, %s10
    %p162 = scmp.lt.s32.totalorder %s10, 3
    %p163 = pnand %p161, %p162
    %p164 = pneg %p163
    // Predicated region
    $region33: #{conv2d_3x3_pallas.1} parent=5 // pred_check
      _
    $region34: #{conv2d_3x3_pallas.1} parent=5 // pred_check_branch
      %166 = sbr.rel (%p163) target = $region36
    $region35: #{conv2d_3x3_pallas.1} parent=5 // pred_region
      %s167 = ssub.s32 %s10, 1
      %p168 = scmp.lt.s32.totalorder %s15, 1
      %s169 = scalar_select %p168, %s15, 1
      %s170 = smul.addr %s169, 2
      %s171 = smul.addr %s170, 4
      %s172 = scalar_lea.vmem %s0, %s171
      %p173 = pneg %p36
      %p174 = pneg %p33
      %p175 = pneg %p57
      %p176 = pneg %p54
      %p177 = pneg %p78
      %p178 = pneg %p75
      %p179 = pneg %p99
      %p180 = pneg %p96
      %p181 = pneg %p125
      %p182 = pneg %p122
      %p183 = scmp.lt.s32.totalorder %s15, 1
      %s184 = scalar_select %p183, %s15, 1
      %s185 = smul.addr %s184, 2
      %s186 = smul.addr %s185, 8
      %s187 = scalar_lea.vmem %s4, %s186
      %p188 = scmp.lt.s32.totalorder %s15, 1
      %s189 = scalar_select %p188, %s15, 1
      %s190 = smul.addr %s189, 2
      %s191 = smul.addr %s190, 4
      %s192 = scalar_lea.vmem %s0, %s191
      %p193 = scmp.lt.s32.totalorder %s15, 1
      %s194 = scalar_select %p193, %s15, 1
      %s195 = smul.addr %s194, 2
      %s196 = smul.addr %s195, 8
      %s197 = scalar_lea.vmem %s4, %s196
      %v198 = vld [vmem:[%s192] sm:$0x77]
      %v200 = vcombine.high %v198, %v198
      %201 = vrot.lane.b32.xlu0 %v200, 17
      %v202 = vpop.permute.xlu0 %201
      %204 = vrot.lane.b32.xlu0 %v198, 17
      %v205 = vpop.permute.xlu0 %204
      %vm206 = vcmask 138240
      %v207 = vsel %vm206, %v205, %v202
      %v210 = vsel %vm206, %v202, %v205
      %211 = vrot.lane.b32.xlu0 %v200, 16
      %v212 = vpop.permute.xlu0 %211
      %214 = vrot.lane.b32.xlu0 %v198, 16
      %v215 = vpop.permute.xlu0 %214
      %vm216 = vcmask 130048
      %v217 = vsel %vm216, %v215, %v212
      %v219 = vsel %vm216, %v212, %v215
      %220 = vrot.lane.b32.xlu0 %v200, 15
      %v221 = vpop.permute.xlu0 %220
      %223 = vrot.lane.b32.xlu0 %v198, 15
      %v224 = vpop.permute.xlu0 %223
      %vm225 = vcmask 121856
      %v226 = vsel %vm225, %v224, %v221
      %v228 = vsel %vm225, %v221, %v224
      %229 = vrot.lane.b32.xlu0 %v200, 1
      %v230 = vpop.permute.xlu0 %229
      %232 = vrot.lane.b32.xlu0 %v198, 1
      %v233 = vpop.permute.xlu0 %232
      %vm234 = vcmask 7168
      %v235 = vsel %vm234, %v233, %v230
      %v237 = vsel %vm234, %v230, %v233
      %238 = vrot.lane.b32.xlu0 %v198, 127
      %v239 = vpop.permute.xlu0 %238
      %240 = vrot.lane.b32.xlu0 %v200, 127
      %v241 = vpop.permute.xlu0 %240
      %vm242 = vcmask 1039360
      %v243 = vsel %vm242, %v239, %v241
      %v246 = vsel %vm242, %v241, %v239
      %247 = vrot.lane.b32.xlu0 %v198, 113
      %v248 = vpop.permute.xlu0 %247
      %249 = vrot.lane.b32.xlu0 %v200, 113
      %v250 = vpop.permute.xlu0 %249
      %vm251 = vcmask 924672
      %v252 = vsel %vm251, %v248, %v250
      %v255 = vsel %vm251, %v250, %v248
      %256 = vrot.lane.b32.xlu0 %v198, 112
      %v257 = vpop.permute.xlu0 %256
      %258 = vrot.lane.b32.xlu0 %v200, 112
      %v259 = vpop.permute.xlu0 %258
      %vm260 = vcmask 916480
      %v261 = vsel %vm260, %v257, %v259
      %v264 = vsel %vm260, %v259, %v257
      %265 = vrot.lane.b32.xlu0 %v198, 111
      %v266 = vpop.permute.xlu0 %265
      %267 = vrot.lane.b32.xlu0 %v200, 111
      %v268 = vpop.permute.xlu0 %267
      %vm269 = vcmask 908288
      %v270 = vsel %vm269, %v266, %v268
      %v274 = vsel %vm269, %v268, %v266
      %v276 = vrot.slane %v219, 5
      %v277 = vrot.slane %v217, 5
      %v281 = vrot.slane %v228, 2
      %v282 = vrot.slane %v226, 2
      %v286 = vrot.slane %v237, 7
      %v287 = vrot.slane %v235, 7
      %v290 = vcombine.low %v198, %v198
      %v293 = vrot.slane %v243, 1
      %v294 = vrot.slane %v246, 1
      %v298 = vrot.slane %v252, 6
      %v299 = vrot.slane %v255, 6
      %v303 = vrot.slane %v261, 3
      %v304 = vrot.slane %v264, 3
      %vm307 = vcmask 1042432
      %v308 = vsel %vm307, %v210, %v276
      %v309 = vsel %vm307, %v207, %v277
      %vm310 = vcmask 1045504
      %v311 = vsel %vm310, %v308, %v281
      %v312 = vsel %vm310, %v309, %v282
      %vm313 = vcmask 1040384
      %v314 = vsel %vm313, %v281, %v286
      %v315 = vsel %vm313, %v282, %v287
      %vm316 = vcmask 1043456
      %v317 = vsel %vm316, %v314, %v290
      %v318 = vsel %vm316, %v315, %v198
      %vm319 = vcmask 1046528
      %v320 = vsel %vm319, %v317, %v293
      %v321 = vsel %vm319, %v318, %v294
      %vm322 = vcmask 1041408
      %v323 = vsel %vm322, %v293, %v298
      %v324 = vsel %vm322, %v294, %v299
      %vm325 = vcmask 1044480
      %v326 = vsel %vm325, %v323, %v303
      %v327 = vsel %vm325, %v324, %v304
      %v328 = vld [vmem:[%s3] sm:$0xff]
      %v329 = vld [vmem:[%s3 + $0x8] sm:$0xff]
      %v330 = vld [vmem:[%s3 + $0x10] sm:$0xff]
      %v331 = vld [vmem:[%s3 + $0x18] sm:$0xff]
      %v332 = vld [vmem:[%s3 + $0x20] sm:$0xff]
      %v333 = vld [vmem:[%s3 + $0x28] sm:$0xff]
      %v334 = vld [vmem:[%s3 + $0x30] sm:$0x7]
      %v335 = vld [vmem:[%s3 + $0x38] sm:$0x7]
      %v336 = vmul.f32 %v311, %v328
      %v337 = vmul.f32 %v312, %v329
      %v338 = vmul.f32 %v320, %v330
      %v339 = vmul.f32 %v321, %v331
      %v340 = vmul.f32 %v326, %v332
      %v341 = vmul.f32 %v327, %v333
      %v342 = vmul.f32 %v270, %v334
      %v343 = vmul.f32 %v274, %v335
      %v344 = vld [vmem:[%s1] sm:$0x3f]
      %v345 = vld [vmem:[%s2] sm:$0x3f]
      %347 = vset.pattern.permute.xlu0 0
      %348 = vperm.xlu0 %347, %v345
      %v349 = vpop.permute.xlu0 %348
      %vm351 = vcmask 220160
      %v353 = vsel %vm351, %v344, 0
      %v356 = vsel %vm307, %v342, 0
      %v359 = vsel %vm307, %v343, 0
      %361 = vmatprep.subr.mxu0 0.0
      %362 = vmatpush1.msra.mxu0 0.0
      %363 = vmatprep.subr.mxu0 0.0
      %364 = vmatpush1.msra.mxu0 0.0
      %365 = vmatprep.subr.mxu0 0.0
      %366 = vmatpush1.msra.mxu0 0.0
      %367 = vmatprep.subr.mxu0 0.0
      %368 = vmatpush1.msra.mxu0 0.0
      %369 = vmatprep.subr.mxu0 0.0
      %370 = vmatpush1.msra.mxu0 0.0
      %371 = vmatprep.subr.mxu0 0.0
      %372 = vmatpush1.msra.mxu0 0.0
      %373 = vmatprep.subr.mxu0 0.0
      %374 = vmatpush1.msra.mxu0 0.0
      %375 = vmatprep.subr.mxu0 0.0
      %376 = vmatpush1.msra.mxu0 0.0
      %377 = vmatprep.subr.mxu0 0.0
      %378 = vmatpush1.msra.mxu0 0.0
      %379 = vmatprep.subr.mxu0 0.0
      %380 = vmatpush1.msra.mxu0 0.0
      %381 = vmatprep.subr.mxu0 0.0
      %382 = vmatpush1.msra.mxu0 0.0
      %383 = vmatprep.subr.mxu0 0.0
      %384 = vmatpush1.msra.mxu0 0.0
      %385 = vmatprep.subr.mxu0 %v359
      %386 = vmatpush1.msra.mxu0 %v356
      %387 = vmatprep.subr.mxu0 %v341
      %388 = vmatpush1.msra.mxu0 %v340
      %389 = vmatprep.subr.mxu0 %v339
      %390 = vmatpush1.msra.mxu0 %v338
      %391 = vmatprep.subr.mxu0 %v337
      %392 = vmatpush1.msra.mxu0 %v336
      %393 = vmatprep.subr.mxu0 0.0
      %394 = vmatpush2.msra.mxu0 0.0
      %395 = vmatprep.subr.mxu0 0.0
      %396 = vmatpush2.msra.mxu0 0.0
      %397 = vmatprep.subr.mxu0 0.0
      %398 = vmatpush2.msra.mxu0 0.0
      %399 = vmatprep.subr.mxu0 0.0
      %400 = vmatpush2.msra.mxu0 0.0
      %401 = vmatprep.subr.mxu0 0.0
      %402 = vmatpush2.msra.mxu0 0.0
      %403 = vmatprep.subr.mxu0 0.0
      %404 = vmatpush2.msra.mxu0 0.0
      %405 = vmatprep.subr.mxu0 0.0
      %406 = vmatpush2.msra.mxu0 0.0
      %407 = vmatprep.subr.mxu0 0.0
      %408 = vmatpush2.msra.mxu0 0.0
      %409 = vmatprep.subr.mxu0 0.0
      %410 = vmatpush2.msra.mxu0 0.0
      %411 = vmatprep.subr.mxu0 0.0
      %412 = vmatpush2.msra.mxu0 0.0
      %413 = vmatprep.subr.mxu0 0.0
      %414 = vmatpush2.msra.mxu0 0.0
      %415 = vmatprep.subr.mxu0 0.0
      %416 = vmatpush2.msra.mxu0 0.0
      %417 = vmatprep.subr.mxu0 0.0
      %418 = vmatpush2.msra.mxu0 0.0
      %419 = vmatprep.subr.mxu0 0.0
      %420 = vmatpush2.msra.mxu0 0.0
      %421 = vmatprep.subr.mxu0 0.0
      %422 = vmatpush2.msra.mxu0 0.0
      %423 = vmatprep.subr.mxu0 0.0
      %424 = vmatpush2.msra.mxu0 0.0
      %425 = vmatprep.mubr.f32.mxu0 0.0
      %426 = vmatmul.mubr.f32.gmra.mxu0 %v353
      %v427 = vpop.f32.mrf.mxu0
      %v428 = vadd.f32 %v349, %v427
      %v429 = vpop.f32.mrf.mxu0
      %v430 = vadd.f32 %v349, %v429
      %431 = vdwg.mxu0
      %432 = vst [vmem:[%s197] sm:$0x3f] %v428
      %433 = vst [vmem:[%s197 + $0x8] sm:$0x3f] %v430
      %p434 = scmp.lt.s32.totalorder %s15, 1
      %s435 = scalar_select %p434, %s15, 1
      %s436 = smul.addr %s435, 2
      %s437 = smul.addr %s436, 8
      %s438 = scalar_lea.vmem %s4, %s437
      // Predicated region
      $region37: #{conv2d_3x3_pallas.1} parent=35 // pred_check
        %p439 = pneg %p122
      $region38: #{conv2d_3x3_pallas.1} parent=35 // pred_check_branch
        %441 = sbr.rel (%p439) target = $region40
      $region39: #{conv2d_3x3_pallas.1} parent=35 // pred_region
        _
      $region40: #{conv2d_3x3_pallas.1} parent=35 // pred_fallthru
        _
    $region36: #{conv2d_3x3_pallas.1} parent=5 // pred_fallthru
      _
    %p442 = scmp.le.s32.totalorder 2, %s10
    // Predicated region
    $region41: #{conv2d_3x3_pallas.1} parent=5 // pred_check
      %p443 = pneg %p442
    $region42: #{conv2d_3x3_pallas.1} parent=5 // pred_check_branch
      %445 = sbr.rel (%p443) target = $region44
    $region43: #{conv2d_3x3_pallas.1} parent=5 // pred_region
      %s446 = ssub.s32 %s10, 2
      // Predicated region
      $region45: #{conv2d_3x3_pallas.1} parent=43 // pred_check
        %p447 = pneg %p128
      $region46: #{conv2d_3x3_pallas.1} parent=43 // pred_check_branch
        %449 = sbr.rel (%p447) target = $region48
      $region47: #{conv2d_3x3_pallas.1} parent=43 // pred_region
        %p450 = scmp.lt.s32.totalorder %s16, 1
        %s451 = scalar_select %p450, %s16, 1
        %s452 = smul.addr %s451, 2
        %s453 = smul.addr %s452, 8
        %s454 = scalar_lea.vmem %s4, %s453
      $region48: #{conv2d_3x3_pallas.1} parent=43 // pred_fallthru
        _
    $region44: #{conv2d_3x3_pallas.1} parent=5 // pred_fallthru
      _
  $region6: #{conv2d_3x3_pallas.1} parent=0 // loop_footer
    %s14 = sadd.s32 1, %s10
  $region7: #{conv2d_3x3_pallas.1} parent=0 // loop_footer_branch
    %9 = sbr.rel target = $region3
  $region8: #{conv2d_3x3_pallas.1} parent=0 // loop_exit
    _

</llo_original>
